<compile_context>
chip_gen: v5e
topology: v5e:2x2
jax: 0.10.0
libtpu: 0.0.40
codegen_flags: <defaults>
</compile_context>

<pallas_src>
import functools

import jax
import jax.numpy as jnp
from jax import lax
from jax.experimental import pallas as pl
from jax.experimental.pallas import tpu as pltpu

# ----------------------------- config -----------------------------
CLIP_DIM = 32        # clip_embedding_dim
PHI_DIM = 64         # phi_embedding_dim (hidden size of tiny synthetic phi)
N_HEADS = 4
HEAD_DIM = PHI_DIM // N_HEADS
MLP_DIM = 128
VOCAB = 256
N_LAYERS = 1
LORA_RANK = 4
LORA_ALPHA = 8.0
LORA_SCALE = LORA_ALPHA / LORA_RANK
RMS_EPS = 1e-5
ROPE_BASE = 10000.0
NEG_INF = -1e30


# ----------------------------- in-kernel helpers -----------------------------
def _gelu_tanh(h):
    return 0.5 * h * (1.0 + jnp.tanh(0.7978845608028654 * (h + 0.044715 * h * h * h)))


def _rmsnorm(x, g, eps):
    var = jnp.mean(x * x, axis=-1, keepdims=True)
    return x * lax.rsqrt(var + eps) * g


def _layer_body(x, kb, cos_qk, sin_qk, ln1, ln2, wqkv, wo, wgu, wd,
                *, sm_scale, eps, n_heads, head_dim, mlp_dim):
    """One decoder layer on an (S, D) fp32 activation slab.  Weights are bf16 [in, out]."""
    S, D = x.shape
    half = head_dim // 2

    # Additive attention bias (causal + key padding) built in-kernel: no (S,S) HBM traffic.
    row = lax.broadcasted_iota(jnp.int32, (S, S), 0)
    col = lax.broadcasted_iota(jnp.int32, (S, S), 1)
    bias = jnp.where(row >= col, 0.0, NEG_INF).astype(jnp.float32) + kb      # (S, S)

    # ---- attention ----
    h = _rmsnorm(x, ln1, eps)
    qkv = jnp.dot(h.astype(jnp.bfloat16), wqkv,
                  preferred_element_type=jnp.float32)                        # (S, 3D) f32

    # RoPE on the full-width q|k slab.  rotate-half == swap the two halves inside each
    # head: realized with two lane rotations + a lane select; the sign of the rotated
    # half is pre-folded into sin_qk on the host.
    qk = qkv[:, :2 * D]                                                      # (S, 2D) lane-aligned
    v_all = qkv[:, 2 * D:]                                                   # (S, D)
    lane = lax.broadcasted_iota(jnp.int32, (S, 2 * D), 1)
    first_half = (lane & (head_dim - 1)) < half
    from_hi = pltpu.roll(qk, 2 * D - half, 1)   # out[p] = qk[p + half]  (x2 -> first half)
    from_lo = pltpu.roll(qk, half, 1)           # out[p] = qk[p - half]  (x1 -> second half)
    perm = jnp.where(first_half, from_hi, from_lo)
    qk_rot = qk * cos_qk + perm * sin_qk                                     # (S, 2D)

    # Per-head attention; head-concat folded into the o-projection accumulation.
    attn = jnp.zeros((S, D), jnp.float32)
    for hh in range(n_heads):
        lo = hh * head_dim
        qh = qk_rot[:, lo:lo + head_dim]
        kh = qk_rot[:, D + lo:D + lo + head_dim]
        vh = v_all[:, lo:lo + head_dim]
        s = lax.dot_general(qh, kh, (((1,), (1,)), ((), ())),
                            preferred_element_type=jnp.float32) * sm_scale + bias
        m = jnp.max(s, axis=-1, keepdims=True)
        p = jnp.exp(s - m)
        p = p * pl.reciprocal(jnp.sum(p, axis=-1, keepdims=True), approx=True)
        ctx = jnp.dot(p, vh, preferred_element_type=jnp.float32)             # (S, Dh)
        attn = attn + jnp.dot(ctx.astype(jnp.bfloat16), wo[lo:lo + head_dim, :],
                              preferred_element_type=jnp.float32)
    x = x + attn

    # ---- MLP (SwiGLU) ----
    h2 = _rmsnorm(x, ln2, eps)
    gu = jnp.dot(h2.astype(jnp.bfloat16), wgu,
                 preferred_element_type=jnp.float32)                         # (S, 2*MLP)
    g = gu[:, :mlp_dim]
    u = gu[:, mlp_dim:]
    act = g * (1.0 / (1.0 + jnp.exp(-g))) * u
    x = x + jnp.dot(act.astype(jnp.bfloat16), wd, preferred_element_type=jnp.float32)
    return x


# ----------------------------- kernels -----------------------------
def _projection_kernel(x_ref, w1_ref, b1_ref, w2_ref, b2_ref, o_ref):
    # CLIPToPhiProjection: Linear(clip->phi) + GELU + Linear(phi->phi), fused.
    x = x_ref[...].astype(jnp.bfloat16)
    h = jnp.dot(x, w1_ref[...], preferred_element_type=jnp.float32) + b1_ref[...]
    h = _gelu_tanh(h)
    y = jnp.dot(h.astype(jnp.bfloat16), w2_ref[...],
                preferred_element_type=jnp.float32) + b2_ref[...]
    o_ref[...] = y.astype(o_ref.dtype)


def _decoder_layer_kernel(x_ref, kb_ref, cos_ref, sin_ref, ln1_ref, ln2_ref,
                          wqkv_ref, wo_ref, wgu_ref, wd_ref, o_ref,
                          *, sm_scale, eps, n_heads, head_dim, mlp_dim):
    x = _layer_body(x_ref[0].astype(jnp.float32), kb_ref[0], cos_ref[...], sin_ref[...],
                    ln1_ref[...], ln2_ref[...], wqkv_ref[...], wo_ref[...],
                    wgu_ref[...], wd_ref[...],
                    sm_scale=sm_scale, eps=eps, n_heads=n_heads,
                    head_dim=head_dim, mlp_dim=mlp_dim)
    o_ref[0] = x.astype(o_ref.dtype)


def _decoder_layer_head_kernel(x_ref, kb_ref, cos_ref, sin_ref, ln1_ref, ln2_ref,
                               wqkv_ref, wo_ref, wgu_ref, wd_ref, lnf_ref, lmw_ref,
                               o_ref, *, sm_scale, eps, n_heads, head_dim, mlp_dim):
    # Last decoder layer + final RMSNorm + (LoRA-merged) lm_head, all fused.
    x = _layer_body(x_ref[0].astype(jnp.float32), kb_ref[0], cos_ref[...], sin_ref[...],
                    ln1_ref[...], ln2_ref[...], wqkv_ref[...], wo_ref[...],
                    wgu_ref[...], wd_ref[...],
                    sm_scale=sm_scale, eps=eps, n_heads=n_heads,
                    head_dim=head_dim, mlp_dim=mlp_dim)
    h = _rmsnorm(x, lnf_ref[...], eps)
    o_ref[0] = jnp.dot(h.astype(jnp.bfloat16), lmw_ref[...],
                       preferred_element_type=jnp.float32).astype(o_ref.dtype)


# ----------------------------- wrappers -----------------------------
_STATICS = dict(sm_scale=1.0 / (HEAD_DIM ** 0.5), eps=RMS_EPS,
                n_heads=N_HEADS, head_dim=HEAD_DIM, mlp_dim=MLP_DIM)


def clip_projection(x, w1, b1, w2, b2):
    M = x.shape[0]
    D = w2.shape[1]
    # Tiny problem: no grid, whole operands resident in VMEM, one kernel invocation.
    return pl.pallas_call(
        _projection_kernel,
        out_shape=jax.ShapeDtypeStruct((M, D), jnp.bfloat16),
    )(x, w1, b1, w2, b2)


def _layer_in_specs(S, D):
    # NOTE: the weight / RoPE-table operands are grid-invariant (constant index_map) so
    # they are fetched only once across the batch grid; at these sizes the default
    # double-buffer VMEM cost is trivial (single-buffer them at real Phi scale).
    return [
        pl.BlockSpec((1, S, D), lambda b: (b, 0, 0)),          # x
        pl.BlockSpec((1, 1, S), lambda b: (b, 0, 0)),          # key-padding bias row
        pl.BlockSpec((S, 2 * D), lambda b: (0, 0)),            # cos (tiled over q|k heads)
        pl.BlockSpec((S, 2 * D), lambda b: (0, 0)),            # sign-folded sin
        pl.BlockSpec((1, D), lambda b: (0, 0)),                # ln1
        pl.BlockSpec((1, D), lambda b: (0, 0)),                # ln2
        pl.BlockSpec((D, 3 * D), lambda b: (0, 0)),            # wqkv (merged LoRA, bf16)
        pl.BlockSpec((D, D), lambda b: (0, 0)),                # wo
        pl.BlockSpec((D, 2 * MLP_DIM), lambda b: (0, 0)),      # w_gate|up
        pl.BlockSpec((MLP_DIM, D), lambda b: (0, 0)),          # w_down
    ]


def decoder_layer(x, key_bias, cos_qk, sin_qk, lp):
    B, S, D = x.shape
    kernel = functools.partial(_decoder_layer_kernel, **_STATICS)
    return pl.pallas_call(
        kernel,
        out_shape=jax.ShapeDtypeStruct((B, S, D), jnp.bfloat16),
        grid=(B,),
        in_specs=_layer_in_specs(S, D),
        out_specs=pl.BlockSpec((1, S, D), lambda b: (b, 0, 0)),
        compiler_params=pltpu.CompilerParams(dimension_semantics=("parallel",)),
    )(x, key_bias, cos_qk, sin_qk, lp['ln1'], lp['ln2'],
      lp['wqkv'], lp['wo'], lp['wgu'], lp['wd'])


def decoder_layer_with_head(x, key_bias, cos_qk, sin_qk, lp, ln_f, lm_w):
    B, S, D = x.shape
    V = lm_w.shape[1]
    kernel = functools.partial(_decoder_layer_head_kernel, **_STATICS)
    in_specs = _layer_in_specs(S, D) + [
        pl.BlockSpec((1, D), lambda b: (0, 0)),                # ln_f
        pl.BlockSpec((D, V), lambda b: (0, 0)),                # lm_head (merged LoRA)
    ]
    return pl.pallas_call(
        kernel,
        out_shape=jax.ShapeDtypeStruct((B, S, V), jnp.float32),
        grid=(B,),
        in_specs=in_specs,
        out_specs=pl.BlockSpec((1, S, V), lambda b: (b, 0, 0)),
        compiler_params=pltpu.CompilerParams(dimension_semantics=("parallel",)),
    )(x, key_bias, cos_qk, sin_qk, lp['ln1'], lp['ln2'],
      lp['wqkv'], lp['wo'], lp['wgu'], lp['wd'], ln_f, lm_w)


# ----------------------------- params -----------------------------
def init_params(key):
    keys = iter(jax.random.split(key, 64))

    def dense(shape, scale=0.02):
        return (scale * jax.random.normal(next(keys), shape)).astype(jnp.float32)

    p = {
        'proj_w1': dense((PHI_DIM, CLIP_DIM)),     # [out, in] (PyTorch convention)
        'proj_b1': jnp.zeros((1, PHI_DIM), jnp.float32),
        'proj_w2': dense((PHI_DIM, PHI_DIM)),
        'proj_b2': jnp.zeros((1, PHI_DIM), jnp.float32),
        'embed': dense((VOCAB, PHI_DIM)),
        'ln_f': jnp.ones((1, PHI_DIM), jnp.float32),
        'lm_w': dense((VOCAB, PHI_DIM)),
        'lm_a': dense((LORA_RANK, PHI_DIM)),
        'lm_b': dense((VOCAB, LORA_RANK)),         # nonzero to exercise the LoRA path
        'layers': [],
    }
    proj_shapes = {'q': (PHI_DIM, PHI_DIM), 'k': (PHI_DIM, PHI_DIM),
                   'v': (PHI_DIM, PHI_DIM), 'o': (PHI_DIM, PHI_DIM),
                   'gate': (MLP_DIM, PHI_DIM), 'up': (MLP_DIM, PHI_DIM),
                   'down': (PHI_DIM, MLP_DIM)}
    for _ in range(N_LAYERS):
        l = {'ln1': jnp.ones((1, PHI_DIM), jnp.float32),
             'ln2': jnp.ones((1, PHI_DIM), jnp.float32)}
        for name, (nout, nin) in proj_shapes.items():
            l[name + '_w'] = dense((nout, nin))
            l[name + '_a'] = dense((LORA_RANK, nin))
            l[name + '_b'] = dense((nout, LORA_RANK))
        p['layers'].append(l)
    return p


def prepare_inference_params(p):
    """Merge LoRA into base weights in fp32 (W_eff = W + scale * B @ A), transpose to
    [in, out], fuse Q/K/V and gate/up, then cast matmul weights to bf16.  Host-side,
    once, outside the kernels."""
    def merge(w, a, b):
        return (w + LORA_SCALE * (b @ a)).T.astype(jnp.bfloat16)   # -> [in, out] bf16

    ip = {
        'proj_w1': p['proj_w1'].T.astype(jnp.bfloat16),
        'proj_b1': p['proj_b1'],
        'proj_w2': p['proj_w2'].T.astype(jnp.bfloat16),
        'proj_b2': p['proj_b2'],
        'embed': p['embed'].astype(jnp.bfloat16),
        'ln_f': p['ln_f'],
        'lm_w': merge(p['lm_w'], p['lm_a'], p['lm_b']),            # (D, VOCAB)
        'layers': [],
    }
    for l in p['layers']:
        wq = merge(l['q_w'], l['q_a'], l['q_b'])                   # (D, D)
        wk = merge(l['k_w'], l['k_a'], l['k_b'])
        wv = merge(l['v_w'], l['v_a'], l['v_b'])
        wg = merge(l['gate_w'], l['gate_a'], l['gate_b'])          # (D, MLP)
        wu = merge(l['up_w'], l['up_a'], l['up_b'])
        ip['layers'].append({
            'ln1': l['ln1'], 'ln2': l['ln2'],
            'wqkv': jnp.concatenate([wq, wk, wv], axis=1),         # (D, 3D)
            'wo': merge(l['o_w'], l['o_a'], l['o_b']),             # (D, D)
            'wgu': jnp.concatenate([wg, wu], axis=1),              # (D, 2*MLP)
            'wd': merge(l['down_w'], l['down_a'], l['down_b']),    # (MLP, D)
        })
    return ip


# ----------------------------- forward -----------------------------
def _rope_tables(S):
    inv_freq = 1.0 / (ROPE_BASE ** (jnp.arange(0, HEAD_DIM, 2, dtype=jnp.float32) / HEAD_DIM))
    freqs = jnp.arange(S, dtype=jnp.float32)[:, None] * inv_freq[None, :]
    emb = jnp.concatenate([freqs, freqs], axis=-1)                 # (S, Dh)
    sign = jnp.concatenate([-jnp.ones((HEAD_DIM // 2,), jnp.float32),
                            jnp.ones((HEAD_DIM // 2,), jnp.float32)])
    cos_qk = jnp.tile(jnp.cos(emb), (1, 2 * N_HEADS))              # (S, 2D)
    sin_qk = jnp.tile(jnp.sin(emb) * sign, (1, 2 * N_HEADS))       # (S, 2D), sign folded
    return cos_qk.astype(jnp.float32), sin_qk.astype(jnp.float32)


def multimodal_phi_forward(ip, input_ids, attention_mask, clip_embeddings):
    B, T = input_ids.shape
    _, S_img, Dc = clip_embeddings.shape
    D = PHI_DIM
    S = S_img + T
    S_pad = ((S + 7) // 8) * 8        # full-sublane vregs / unmasked stores

    # 1) projection of CLIP embeddings into phi embedding space (fused Pallas kernel)
    proj = clip_projection(clip_embeddings.reshape(B * S_img, Dc),
                           ip['proj_w1'], ip['proj_b1'],
                           ip['proj_w2'], ip['proj_b2']).reshape(B, S_img, D)

    # 2) token embeddings + concat along sequence dim (torch.cat(..., dim=1)); pad seq
    tok = jnp.take(ip['embed'], input_ids, axis=0)                 # (B, T, D) bf16
    x = jnp.concatenate([proj, tok], axis=1)                       # (B, S, D)
    x = jnp.pad(x, ((0, 0), (0, S_pad - S), (0, 0)))               # (B, S_pad, D)

    # per-batch additive key-padding bias row; the causal part is built in-kernel
    am = jnp.pad(attention_mask, ((0, 0), (0, S_pad - S)))
    key_bias = jnp.where(am > 0, 0.0, NEG_INF).astype(jnp.float32).reshape(B, 1, S_pad)

    cos_qk, sin_qk = _rope_tables(S_pad)

    # 3) decoder layers (merged-LoRA); the last layer fuses final RMSNorm + lm_head
    for lp in ip['layers'][:-1]:
        x = decoder_layer(x, key_bias, cos_qk, sin_qk, lp)
    logits = decoder_layer_with_head(x, key_bias, cos_qk, sin_qk,
                                     ip['layers'][-1], ip['ln_f'], ip['lm_w'])
    return logits[:, :S, :]


# ----------------------------- main -----------------------------
if __name__ == "__main__":
    key = jax.random.PRNGKey(0)
    kp, ki, kc = jax.random.split(key, 3)
    params = init_params(kp)
    infer_params = prepare_inference_params(params)

    B, T, S_IMG = 2, 8, 4
    input_ids = jax.random.randint(ki, (B, T), 0, VOCAB, dtype=jnp.int32)
    attention_mask = jnp.ones((B, S_IMG + T), dtype=jnp.int32)
    clip_embeddings = jax.random.normal(kc, (B, S_IMG, CLIP_DIM), dtype=jnp.float32)

    logits = multimodal_phi_forward(infer_params, input_ids, attention_mask, clip_embeddings)
    jax.block_until_ready(logits)
    assert logits.shape == (B, S_IMG + T, VOCAB)
    assert bool(jnp.all(jnp.isfinite(logits)))
    print("KERNEL_OK")
</pallas_src>

<mosaic_0001>
module attributes {stable_mosaic.version = 11 : i64} {
  func.func @_projection_kernel(%arg0: memref<8x32xf32, #tpu.memory_space<vmem>>, %arg1: memref<32x64xbf16, #tpu.memory_space<vmem>>, %arg2: memref<1x64xf32, #tpu.memory_space<vmem>>, %arg3: memref<64x64xbf16, #tpu.memory_space<vmem>>, %arg4: memref<1x64xf32, #tpu.memory_space<vmem>>, %arg5: memref<8x64xbf16, #tpu.memory_space<vmem>>) attributes {dimension_semantics = [], scalar_prefetch = 0 : i64, scratch_operands = 0 : i64, tpu.core_type = #tpu.core_type<tc>} {
    %c0 = arith.constant 0 : index
    %c0_0 = arith.constant 0 : index
    %0 = vector.load %arg0[%c0, %c0_0] : memref<8x32xf32, #tpu.memory_space<vmem>>, vector<8x32xf32>
    %1 = arith.truncf %0 : vector<8x32xf32> to vector<8x32xbf16>
    %c0_1 = arith.constant 0 : index
    %c0_2 = arith.constant 0 : index
    %2 = vector.load %arg1[%c0_1, %c0_2] : memref<32x64xbf16, #tpu.memory_space<vmem>>, vector<32x64xbf16>
    %cst = arith.constant dense<0.000000e+00> : vector<8x64xf32>
    %3 = tpu.matmul %1, %2, %cst {dimension_numbers = #tpu.dot_dimension_numbers<[1], [0], [0], [1], [0, 0, 1, 1], [], []>} : vector<8x32xbf16>, vector<32x64xbf16>, vector<8x64xf32> -> vector<8x64xf32>
    %c0_3 = arith.constant 0 : index
    %c0_4 = arith.constant 0 : index
    %4 = vector.load %arg2[%c0_3, %c0_4] : memref<1x64xf32, #tpu.memory_space<vmem>>, vector<1x64xf32>
    %5 = vector.broadcast %4 : vector<1x64xf32> to vector<8x64xf32>
    %6 = arith.addf %3, %5 : vector<8x64xf32>
    %cst_5 = arith.constant 5.000000e-01 : f32
    %7 = vector.broadcast %cst_5 : f32 to vector<8x64xf32>
    %8 = arith.mulf %7, %6 : vector<8x64xf32>
    %cst_6 = arith.constant 4.471500e-02 : f32
    %9 = vector.broadcast %cst_6 : f32 to vector<8x64xf32>
    %10 = arith.mulf %9, %6 : vector<8x64xf32>
    %11 = arith.mulf %10, %6 : vector<8x64xf32>
    %12 = arith.mulf %11, %6 : vector<8x64xf32>
    %13 = arith.addf %6, %12 : vector<8x64xf32>
    %cst_7 = arith.constant 0.797884583 : f32
    %14 = vector.broadcast %cst_7 : f32 to vector<8x64xf32>
    %15 = arith.mulf %14, %13 : vector<8x64xf32>
    %16 = math.tanh %15 : vector<8x64xf32>
    %cst_8 = arith.constant 1.000000e+00 : f32
    %17 = vector.broadcast %cst_8 : f32 to vector<8x64xf32>
    %18 = arith.addf %17, %16 : vector<8x64xf32>
    %19 = arith.mulf %8, %18 : vector<8x64xf32>
    %20 = arith.truncf %19 : vector<8x64xf32> to vector<8x64xbf16>
    %c0_9 = arith.constant 0 : index
    %c0_10 = arith.constant 0 : index
    %21 = vector.load %arg3[%c0_9, %c0_10] : memref<64x64xbf16, #tpu.memory_space<vmem>>, vector<64x64xbf16>
    %cst_11 = arith.constant dense<0.000000e+00> : vector<8x64xf32>
    %22 = tpu.matmul %20, %21, %cst_11 {dimension_numbers = #tpu.dot_dimension_numbers<[1], [0], [0], [1], [0, 0, 1, 1], [], []>} : vector<8x64xbf16>, vector<64x64xbf16>, vector<8x64xf32> -> vector<8x64xf32>
    %c0_12 = arith.constant 0 : index
    %c0_13 = arith.constant 0 : index
    %23 = vector.load %arg4[%c0_12, %c0_13] : memref<1x64xf32, #tpu.memory_space<vmem>>, vector<1x64xf32>
    %24 = vector.broadcast %23 : vector<1x64xf32> to vector<8x64xf32>
    %25 = arith.addf %22, %24 : vector<8x64xf32>
    %26 = arith.truncf %25 : vector<8x64xf32> to vector<8x64xbf16>
    %c0_14 = arith.constant 0 : index
    %c0_15 = arith.constant 0 : index
    %27 = vector.load %arg5[%c0_14, %c0_15] : memref<8x64xbf16, #tpu.memory_space<vmem>>, vector<8x64xbf16>
    tpu.vector_store %arg5[%c0_14, %c0_15], %26 {strides = array<i32>} : memref<8x64xbf16, #tpu.memory_space<vmem>>, vector<8x64xbf16>,
    return
  }
}

</mosaic_0001>

<llo_original>
// kernel: tpu_custom_call.1
$region0: #{tpu_custom_call.1}
  #allocation0 [shape = 'u32[]', space=smem, size = 0x4, offset = 0x4, fixed_abs, tag = 'smem constant byte address 0x4 - core index']
  #allocation1 [shape = 'u32[72,128]{1,0:T(1,128)}', space=vmem, size = 0x9000, scoped, tag = 'internal scratch']
  %s0 = inlined_call_operand.hbm [shape: f32[8,32], index: 0, kind: input, shape index: {}]
  %s1 = inlined_call_operand.hbm [shape: bf16[32,64], index: 1, kind: input, shape index: {}]
  %s2 = inlined_call_operand.vmem [shape: f32[1,64], index: 2, kind: input, shape index: {}]
  %s3 = inlined_call_operand.hbm [shape: bf16[64,64], index: 3, kind: input, shape index: {}]
  %s4 = inlined_call_operand.vmem [shape: f32[1,64], index: 4, kind: input, shape index: {}]
  %s5 = inlined_call_operand.hbm [shape: bf16[8,64], index: 5, kind: output, shape index: {}]
  %s6 = sld [smem:[#allocation0]]
  $region42: #{tpu_custom_call.1} parent=0
    _
  %s8 = ssub.s32 1, %s6
  %s9 = scalar_select 0, %s8, %s6
  $region1: #{tpu_custom_call.1} parent=0
    #allocation2 [shape = 'u8[4096]{0}', space=vmem, size = 0x1000, scoped, tag = 'input window, operand 0, single buffered']
    #allocation3 [shape = 's32[1]{0}', space=sflag, size = 0x4, scoped, tag = 'scoped memory for tpu_custom_call.1']
    #allocation4 [shape = 's32[1]{0}', space=sflag, size = 0x4, scoped, tag = 'scoped memory for tpu_custom_call.1']
    #allocation5 [shape = 'u8[8192]{0}', space=vmem, size = 0x2000, scoped, tag = 'input window, operand 1, single buffered']
    #allocation6 [shape = 's32[1]{0}', space=sflag, size = 0x4, scoped, tag = 'scoped memory for tpu_custom_call.1']
    #allocation7 [shape = 'u8[16384]{0}', space=vmem, size = 0x4000, scoped, tag = 'input window, operand 3, single buffered']
    #allocation8 [shape = 'u8[2048]{0}', space=vmem, size = 0x800, scoped, tag = 'output window, operand 0, single buffered']
    %10 = vsyncpa [#allocation3], 0
    %11 = vsyncpa [#allocation6], 0
    %12 = vsyncpa [#allocation4], 0
    // Predicated region
    $region2: #{tpu_custom_call.1} parent=1 // pred_check
      _
    $region3: #{tpu_custom_call.1} parent=1 // pred_check_branch
      %14 = sbr.rel (0) target = $region5
    $region4: #{tpu_custom_call.1} parent=1 // pred_region
      %16 = vsyncadd [#allocation3], 0
      %s18 = sshll.u32 %s0, 4
      %s19 = int_to_ptr.hbm [resolvable:$true] %s18
      %s20 = sshll.u32 [#allocation2], 4
      %s21 = int_to_ptr.vmem [resolvable:$true] %s20
      %23 = dma.hbm_to_vmem [thread:$0]  %s19, 128, %s21, [#allocation3]
    $region5: #{tpu_custom_call.1} parent=1 // pred_fallthru
      _
    // Predicated region
    $region6: #{tpu_custom_call.1} parent=1 // pred_check
      _
    $region7: #{tpu_custom_call.1} parent=1 // pred_check_branch
      %25 = sbr.rel (0) target = $region9
    $region8: #{tpu_custom_call.1} parent=1 // pred_region
      %27 = vsyncadd [#allocation6], 0
      %s28 = sshll.u32 %s1, 4
      %s29 = int_to_ptr.hbm [resolvable:$true] %s28
      %s30 = sshll.u32 [#allocation5], 4
      %s31 = int_to_ptr.vmem [resolvable:$true] %s30
      %36 = dma.hbm_to_vmem [thread:$0]  %s29, 256, %s31, [#allocation6], 64, 64, 4
    $region9: #{tpu_custom_call.1} parent=1 // pred_fallthru
      _
    // Predicated region
    $region10: #{tpu_custom_call.1} parent=1 // pred_check
      _
    $region11: #{tpu_custom_call.1} parent=1 // pred_check_branch
      %38 = sbr.rel (0) target = $region13
    $region12: #{tpu_custom_call.1} parent=1 // pred_region
      _
    $region13: #{tpu_custom_call.1} parent=1 // pred_fallthru
      _
    // Predicated region
    $region14: #{tpu_custom_call.1} parent=1 // pred_check
      _
    $region15: #{tpu_custom_call.1} parent=1 // pred_check_branch
      %40 = sbr.rel (0) target = $region17
    $region16: #{tpu_custom_call.1} parent=1 // pred_region
      %42 = vsyncadd [#allocation6], 0
      %s43 = sshll.u32 %s3, 4
      %s44 = int_to_ptr.hbm [resolvable:$true] %s43
      %s45 = sshll.u32 [#allocation7], 4
      %s46 = int_to_ptr.vmem [resolvable:$true] %s45
      %51 = dma.hbm_to_vmem [thread:$0]  %s44, 512, %s46, [#allocation6], 64, 64, 4
    $region17: #{tpu_custom_call.1} parent=1 // pred_fallthru
      _
    // Predicated region
    $region18: #{tpu_custom_call.1} parent=1 // pred_check
      _
    $region19: #{tpu_custom_call.1} parent=1 // pred_check_branch
      %53 = sbr.rel (0) target = $region21
    $region20: #{tpu_custom_call.1} parent=1 // pred_region
      _
    $region21: #{tpu_custom_call.1} parent=1 // pred_fallthru
      _
    // Predicated region
    $region22: #{tpu_custom_call.1} parent=1 // pred_check
      _
    $region23: #{tpu_custom_call.1} parent=1 // pred_check_branch
      %55 = sbr.rel (0) target = $region25
    $region24: #{tpu_custom_call.1} parent=1 // pred_region
      %57 = dma.done [#allocation3], 128
    $region25: #{tpu_custom_call.1} parent=1 // pred_fallthru
      _
    // Predicated region
    $region26: #{tpu_custom_call.1} parent=1 // pred_check
      _
    $region27: #{tpu_custom_call.1} parent=1 // pred_check_branch
      %59 = sbr.rel (0) target = $region29
    $region28: #{tpu_custom_call.1} parent=1 // pred_region
      %61 = dma.done [#allocation6], 256
    $region29: #{tpu_custom_call.1} parent=1 // pred_fallthru
      _
    // Predicated region
    $region30: #{tpu_custom_call.1} parent=1 // pred_check
      _
    $region31: #{tpu_custom_call.1} parent=1 // pred_check_branch
      %63 = sbr.rel (0) target = $region33
    $region32: #{tpu_custom_call.1} parent=1 // pred_region
      %65 = dma.done [#allocation6], 512
    $region33: #{tpu_custom_call.1} parent=1 // pred_fallthru
      _
    %v67 = vld [vmem:[#allocation2] sm:$0xff]
    %v68 = vpack.c.bf16 %v67, %v67
    %v69 = vld [vmem:[#allocation5] sm:$0xf]
    %v70 = vld [vmem:[#allocation5 + $0x4] sm:$0xf]
    %v71 = vld [vmem:[#allocation5 + $0x8] sm:$0xf]
    %v72 = vld [vmem:[#allocation5 + $0xc] sm:$0xf]
    %v73 = vld [vmem:[%s2] sm:$0x1]
    %v75 = vperm.slane %v73, 0
    %v81 = vunpack.c.l.b16 %v69
    %v82 = vunpack.c.l.b16 %v70
    %v83 = vunpack.c.l.b16 %v71
    %v84 = vunpack.c.l.b16 %v72
    %v85 = vpack.c.b16 %v82, %v81
    %v86 = vpack.c.b16 %v84, %v83
    %vm89 = vcmask 261120
    %v91 = vsel %vm89, %v68, 0
    %93 = vmatpush.bf16.msra.mxu0 0
    %94 = vmatpush.bf16.msra.mxu0 0
    %95 = vmatpush.bf16.msra.mxu0 0
    %96 = vmatpush.bf16.msra.mxu0 0
    %97 = vmatpush.bf16.msra.mxu0 0
    %98 = vmatpush.bf16.msra.mxu0 0
    %99 = vmatpush.bf16.msra.mxu0 %v86
    %100 = vmatpush.bf16.msra.mxu0 %v85
    %101 = vmatmul.bf16.gmra.mxu0 %v91
    %v102 = vpop.f32.mrf.mxu0
    %v103 = vadd.f32 %v75, %v102
    %v104 = vpop.f32.mrf.mxu0
    %105 = vdwg.mxu0
    %v106 = vmul.f32 %v103, 0.5
    %v107 = vmul.f32 %v103, 0.044715
    %v108 = vmul.f32 %v107, %v103
    %v109 = vmul.f32 %v108, %v103
    %v110 = vadd.f32 %v103, %v109
    %v111 = vmul.f32 %v110, 0.7978846
    %v112 = vtanh.pop %v111
    %v113 = vadd.f32 %v112, 1.0
    %v114 = vmul.f32 %v106, %v113
    %v115 = vpack.c.bf16 %v114, %v114
    %v116 = vld [vmem:[#allocation7] sm:$0xf]
    %v117 = vld [vmem:[#allocation7 + $0x4] sm:$0xf]
    %v118 = vld [vmem:[#allocation7 + $0x8] sm:$0xf]
    %v119 = vld [vmem:[#allocation7 + $0xc] sm:$0xf]
    %v120 = vld [vmem:[#allocation7 + $0x10] sm:$0xf]
    %v121 = vld [vmem:[#allocation7 + $0x14] sm:$0xf]
    %v122 = vld [vmem:[#allocation7 + $0x18] sm:$0xf]
    %v123 = vld [vmem:[#allocation7 + $0x1c] sm:$0xf]
    %v124 = vld [vmem:[%s4] sm:$0x1]
    %v126 = vperm.slane %v124, 0
    %v136 = vunpack.c.l.b16 %v116
    %v137 = vunpack.c.l.b16 %v117
    %v138 = vunpack.c.l.b16 %v118
    %v139 = vunpack.c.l.b16 %v119
    %v140 = vunpack.c.l.b16 %v120
    %v141 = vunpack.c.l.b16 %v121
    %v142 = vunpack.c.l.b16 %v122
    %v143 = vunpack.c.l.b16 %v123
    %v144 = vpack.c.b16 %v137, %v136
    %v145 = vpack.c.b16 %v139, %v138
    %v146 = vpack.c.b16 %v141, %v140
    %v147 = vpack.c.b16 %v143, %v142
    %vm152 = vcmask 523264
    %v154 = vsel %vm152, %v115, 0
    %156 = vmatpush.bf16.msra.mxu0 0
    %157 = vmatpush.bf16.msra.mxu0 0
    %158 = vmatpush.bf16.msra.mxu0 0
    %159 = vmatpush.bf16.msra.mxu0 0
    %160 = vmatpush.bf16.msra.mxu0 %v147
    %161 = vmatpush.bf16.msra.mxu0 %v146
    %162 = vmatpush.bf16.msra.mxu0 %v145
    %163 = vmatpush.bf16.msra.mxu0 %v144
    %164 = vmatmul.bf16.gmra.mxu0 %v154
    %v165 = vpop.f32.mrf.mxu0
    %v166 = vadd.f32 %v126, %v165
    %v167 = vpop.f32.mrf.mxu0
    %168 = vdwg.mxu0
    %v169 = vpack.c.bf16 %v166, %v166
    %vm170 = vcmask 519168
    %171 = vst.msk [vmem:[#allocation8] sm:$0xf] %vm170, %v169
    // Predicated region
    $region34: #{tpu_custom_call.1} parent=1 // pred_check
      _
    $region35: #{tpu_custom_call.1} parent=1 // pred_check_branch
      %173 = sbr.rel (0) target = $region37
    $region36: #{tpu_custom_call.1} parent=1 // pred_region
      %175 = vsyncadd [#allocation4], 0
      %s177 = sshll.u32 [#allocation8], 4
      %s178 = int_to_ptr.vmem [resolvable:$true] %s177
      %s179 = sshll.u32 %s5, 4
      %s180 = int_to_ptr.hbm [resolvable:$true] %s179
      %182 = dma.vmem_to_hbm [thread:$0]  %s178, 64, %s180, [#allocation4]
    $region37: #{tpu_custom_call.1} parent=1 // pred_fallthru
      _
    // Predicated region
    $region38: #{tpu_custom_call.1} parent=1 // pred_check
      _
    $region39: #{tpu_custom_call.1} parent=1 // pred_check_branch
      %184 = sbr.rel (0) target = $region41
    $region40: #{tpu_custom_call.1} parent=1 // pred_region
      %186 = dma.done [#allocation4], 64
    $region41: #{tpu_custom_call.1} parent=1 // pred_fallthru
      _
    %187 = vsyncpa [#allocation3], 1
    %188 = vsyncpa [#allocation6], 1
    %189 = vsyncpa [#allocation4], 1

</llo_original>
